<compile_context>
chip_gen: v5e
topology: v5e:2x2
jax: 0.10.0
libtpu: 0.0.40
codegen_flags: <defaults>
</compile_context>

<pallas_src>
from functools import partial

import jax
import jax.numpy as jnp
from jax.experimental import pallas as pl
from jax.experimental.pallas import tpu as pltpu

_LANE = 128      # vreg lane width
_SUBLANE = 8     # f32 sublane count


def _round_up(x, m):
    return ((x + m - 1) // m) * m


def _rnn_kernel(x_ref, h0_ref,
                wihx_ref, wihh_ref, bih_ref,
                wiox_ref, wioh_ref, bio_ref,
                out_ref, hlast_ref,
                xw_ref):
    """Whole sequence in one invocation; hidden state is a fori_loop carry.

    x_ref:  (T*Bp, I)   inputs, timesteps stacked along sublanes
    xw_ref: (T*Bp, Hp)  VMEM scratch for the hoisted input-path pre-activations
    """
    TB, _ = x_ref.shape
    Bp = h0_ref.shape[0]
    T = TB // Bp

    # ---- Hoisted input path: xw[t] = x[t] @ Wihx + b_ih for all timesteps in
    # one batched MXU matmul, off the serial h-dependence chain. ----
    xw_ref[...] = (jnp.dot(x_ref[...], wihx_ref[...],
                           preferred_element_type=jnp.float32)
                   + bih_ref[...])

    wihh = wihh_ref[...]          # (Hp, Hp) -- held in vregs across the loop
    # (Explicit MXU RHS residency via pltpu.matmul_push_rhs could shave a few
    #  more cycles per step; left to the compiler here for robustness.)

    def step(t, h):
        base = pl.multiple_of(t * Bp, Bp)
        xw_t = xw_ref[pl.ds(base, Bp), :]                       # (Bp, Hp)
        return jnp.tanh(xw_t + jnp.dot(h, wihh,
                                       preferred_element_type=jnp.float32))

    # Recurrence over the first T-1 timesteps; result is the hidden state
    # *entering* the last step (pre-update hidden for t = T-1).  Cap the
    # unroll so long T doesn't blow up code size / compile time.
    unroll = max(1, min(8, T - 1))
    h_prev = jax.lax.fori_loop(0, T - 1, step, h0_ref[...], unroll=unroll)

    # Final step t = T-1: output uses the pre-update hidden (PyTorch order),
    # the returned hidden is the post-update one.
    last = (T - 1) * Bp
    x_last = x_ref[pl.ds(last, Bp), :]                          # (Bp, I)
    out_ref[...] = (jnp.dot(x_last, wiox_ref[...],
                            preferred_element_type=jnp.float32)
                    + jnp.dot(h_prev, wioh_ref[...],
                              preferred_element_type=jnp.float32)
                    + bio_ref[...])
    hlast_ref[...] = jnp.tanh(xw_ref[pl.ds(last, Bp), :]
                              + jnp.dot(h_prev, wihh,
                                        preferred_element_type=jnp.float32))


def prepare_simple_rnn_params(w_i2h, b_i2h, w_i2o, b_i2o, input_size):
    """One-time conversion of PyTorch nn.Linear weights into kernel layout.

    w_i2h: (H, I+H), b_i2h: (H,), w_i2o: (O, I+H), b_i2o: (O,)
    Hidden / output feature dims are zero-padded to a multiple of 128 lanes;
    the padding is mathematically exact (padded lanes stay 0 through the
    recurrence) and gives lane-dense, unmasked vreg ops and stores.
    """
    I = int(input_size)
    H = int(w_i2h.shape[0])
    O = int(w_i2o.shape[0])
    Hp = _round_up(H, _LANE)
    Op = _round_up(O, _LANE)

    w_i2h = jnp.asarray(w_i2h, jnp.float32)
    w_i2o = jnp.asarray(w_i2o, jnp.float32)

    wihx = jnp.zeros((I, Hp), jnp.float32).at[:, :H].set(w_i2h[:, :I].T)
    wihh = jnp.zeros((Hp, Hp), jnp.float32).at[:H, :H].set(w_i2h[:, I:].T)
    bih = jnp.zeros((1, Hp), jnp.float32).at[0, :H].set(jnp.asarray(b_i2h, jnp.float32))
    wiox = jnp.zeros((I, Op), jnp.float32).at[:, :O].set(w_i2o[:, :I].T)
    wioh = jnp.zeros((Hp, Op), jnp.float32).at[:H, :O].set(w_i2o[:, I:].T)
    bio = jnp.zeros((1, Op), jnp.float32).at[0, :O].set(jnp.asarray(b_i2o, jnp.float32))

    return dict(wihx=wihx, wihh=wihh, bih=bih, wiox=wiox, wioh=wioh, bio=bio,
                hidden_size=H, output_size=O)


@partial(jax.jit, static_argnames=("hidden_size", "output_size"))
def _simple_rnn_forward_impl(inp, hidden0, wihx, wihh, bih, wiox, wioh, bio,
                             *, hidden_size, output_size):
    if inp.ndim == 2:
        inp = inp[:, None, :]              # matches inp.unsqueeze(1) for 2-D inputs
    inp = inp.astype(jnp.float32)
    T, B, I = inp.shape
    Hp = wihh.shape[0]
    Op = wioh.shape[1]
    H, O = hidden_size, output_size

    hidden0 = hidden0.astype(jnp.float32)
    if hidden0.shape[0] != B:              # initHidden() gives (1, H): broadcast
        hidden0 = jnp.broadcast_to(hidden0, (B, H))

    # Pad batch to a full sublane multiple; padded rows / feature lanes are
    # exact zeros and are sliced away after the kernel.
    Bp = _round_up(max(B, _SUBLANE), _SUBLANE)
    x_p = jnp.zeros((T, Bp, I), jnp.float32).at[:, :B, :].set(inp)
    x_p = x_p.reshape(T * Bp, I)           # 2-D: timesteps stacked on sublanes
    h0_p = jnp.zeros((Bp, Hp), jnp.float32).at[:B, :H].set(hidden0)

    full2 = lambda i: (0, 0)

    # TODO(synk): for long T / large B, chunk T as a pipelined grid axis (hidden
    # carried in VMEM scratch with pl.when init) instead of whole-sequence VMEM
    # residency, and add a leading 'parallel' batch-shard axis for v7x's 2 TCs.
    out_p, h_p = pl.pallas_call(
        _rnn_kernel,
        out_shape=(
            jax.ShapeDtypeStruct((Bp, Op), jnp.float32),
            jax.ShapeDtypeStruct((Bp, Hp), jnp.float32),
        ),
        grid_spec=pltpu.PrefetchScalarGridSpec(
            num_scalar_prefetch=0,
            grid=(1,),                                  # single invocation
            in_specs=[
                pl.BlockSpec((T * Bp, I), full2),       # whole sequence in VMEM
                pl.BlockSpec((Bp, Hp), full2),          # hidden0 (padded)
                pl.BlockSpec((I, Hp), full2),           # W_i2h input part ^T
                pl.BlockSpec((Hp, Hp), full2),          # W_i2h hidden part ^T
                pl.BlockSpec((1, Hp), full2),           # b_i2h
                pl.BlockSpec((I, Op), full2),           # W_i2o input part ^T
                pl.BlockSpec((Hp, Op), full2),          # W_i2o hidden part ^T
                pl.BlockSpec((1, Op), full2),           # b_i2o
            ],
            out_specs=[
                pl.BlockSpec((Bp, Op), full2),          # output[-1]
                pl.BlockSpec((Bp, Hp), full2),          # hiddens[-1]
            ],
            scratch_shapes=[pltpu.VMEM((T * Bp, Hp), jnp.float32)],
        ),
        compiler_params=pltpu.CompilerParams(
            dimension_semantics=("arbitrary",),         # recurrence is sequential
        ),
    )(x_p, h0_p, wihx, wihh, bih, wiox, wioh, bio)

    return out_p[:B, :O], h_p[:B, :H]


def simple_rnn_forward(inp, hidden0, params):
    """Pallas equivalent of SimpleRNN.forward -> (output[-1], hiddens[-1])."""
    return _simple_rnn_forward_impl(
        inp, hidden0,
        params["wihx"], params["wihh"], params["bih"],
        params["wiox"], params["wioh"], params["bio"],
        hidden_size=params["hidden_size"], output_size=params["output_size"])


def _reference_forward(inp, hidden, w_i2h, b_i2h, w_i2o, b_i2o):
    """Pure-JAX reference mirroring the PyTorch loop (for validation)."""
    if inp.ndim == 2:
        inp = inp[:, None, :]
    out = None
    for t in range(inp.shape[0]):
        x = inp[t]
        combined = jnp.concatenate([x, hidden], axis=1)
        out = combined @ w_i2o.T + b_i2o
        hidden = jnp.tanh(combined @ w_i2h.T + b_i2h)
    return out, hidden


if __name__ == "__main__":
    # Small shapes consistent with the module: seq=8, batch=2, in=4, hidden=32, out=4.
    T, B, I, H, O = 8, 2, 4, 32, 4

    key = jax.random.PRNGKey(0)
    k_inp, k_wh, k_bh, k_wo, k_bo = jax.random.split(key, 5)

    inp = jax.random.normal(k_inp, (T, B, I), dtype=jnp.float32)
    hidden0 = jnp.zeros((B, H), dtype=jnp.float32)      # initHidden, broadcast to batch

    # Deterministic parameter init (PyTorch nn.Linear-style uniform bound).
    bound = 1.0 / jnp.sqrt(jnp.float32(I + H))
    w_i2h = jax.random.uniform(k_wh, (H, I + H), jnp.float32, -bound, bound)
    b_i2h = jax.random.uniform(k_bh, (H,), jnp.float32, -bound, bound)
    w_i2o = jax.random.uniform(k_wo, (O, I + H), jnp.float32, -bound, bound)
    b_i2o = jax.random.uniform(k_bo, (O,), jnp.float32, -bound, bound)

    # One-time parameter preparation (kept out of the per-call jitted path).
    params = prepare_simple_rnn_params(w_i2h, b_i2h, w_i2o, b_i2o, I)
    for v in params.values():
        if isinstance(v, jax.Array):
            v.block_until_ready()

    out_last, h_last = simple_rnn_forward(inp, hidden0, params)
    jax.block_until_ready((out_last, h_last))

    ref_out, ref_h = _reference_forward(inp, hidden0, w_i2h, b_i2h, w_i2o, b_i2o)
    assert out_last.shape == (B, O) and h_last.shape == (B, H)
    assert jnp.allclose(out_last, ref_out, atol=1e-5, rtol=1e-5)
    assert jnp.allclose(h_last, ref_h, atol=1e-5, rtol=1e-5)

    print("KERNEL_OK")
</pallas_src>

<mosaic_0001>
module attributes {stable_mosaic.version = 11 : i64} {
  func.func @_rnn_kernel(%arg0: i32, %arg1: memref<64x4xf32, #tpu.memory_space<vmem>>, %arg2: memref<8x128xf32, #tpu.memory_space<vmem>>, %arg3: memref<4x128xf32, #tpu.memory_space<vmem>>, %arg4: memref<128x128xf32, #tpu.memory_space<vmem>>, %arg5: memref<1x128xf32, #tpu.memory_space<vmem>>, %arg6: memref<4x128xf32, #tpu.memory_space<vmem>>, %arg7: memref<128x128xf32, #tpu.memory_space<vmem>>, %arg8: memref<1x128xf32, #tpu.memory_space<vmem>>, %arg9: memref<8x128xf32, #tpu.memory_space<vmem>>, %arg10: memref<8x128xf32, #tpu.memory_space<vmem>>, %arg11: memref<64x128xf32, #tpu.memory_space<vmem>>) attributes {dimension_semantics = [#tpu.dimension_semantics<arbitrary>], iteration_bounds = array<i64: 1>, scalar_prefetch = 0 : i64, scratch_operands = 1 : i64, tpu.core_type = #tpu.core_type<tc>, window_params = [{pipeline_mode = #tpu.pipeline_mode<synchronous>, transform_indices = @transform_0, window_bounds = array<i64: 64, 4>}, {pipeline_mode = #tpu.pipeline_mode<synchronous>, transform_indices = @transform_1, window_bounds = array<i64: 8, 128>}, {pipeline_mode = #tpu.pipeline_mode<synchronous>, transform_indices = @transform_2, window_bounds = array<i64: 4, 128>}, {pipeline_mode = #tpu.pipeline_mode<synchronous>, transform_indices = @transform_3, window_bounds = array<i64: 128, 128>}, {pipeline_mode = #tpu.pipeline_mode<synchronous>, transform_indices = @transform_4, window_bounds = array<i64: 1, 128>}, {pipeline_mode = #tpu.pipeline_mode<synchronous>, transform_indices = @transform_5, window_bounds = array<i64: 4, 128>}, {pipeline_mode = #tpu.pipeline_mode<synchronous>, transform_indices = @transform_6, window_bounds = array<i64: 128, 128>}, {pipeline_mode = #tpu.pipeline_mode<synchronous>, transform_indices = @transform_7, window_bounds = array<i64: 1, 128>}, {pipeline_mode = #tpu.pipeline_mode<synchronous>, transform_indices = @transform_8, window_bounds = array<i64: 8, 128>}, {pipeline_mode = #tpu.pipeline_mode<synchronous>, transform_indices = @transform_9, window_bounds = array<i64: 8, 128>}]} {
    %c0 = arith.constant 0 : index
    %c0_0 = arith.constant 0 : index
    %0 = vector.load %arg1[%c0, %c0_0] : memref<64x4xf32, #tpu.memory_space<vmem>>, vector<64x4xf32>
    %c0_1 = arith.constant 0 : index
    %c0_2 = arith.constant 0 : index
    %1 = vector.load %arg3[%c0_1, %c0_2] : memref<4x128xf32, #tpu.memory_space<vmem>>, vector<4x128xf32>
    %cst = arith.constant dense<0.000000e+00> : vector<64x128xf32>
    %2 = tpu.matmul %0, %1, %cst {dimension_numbers = #tpu.dot_dimension_numbers<[1], [0], [0], [1], [0, 0, 1, 1], [], []>} : vector<64x4xf32>, vector<4x128xf32>, vector<64x128xf32> -> vector<64x128xf32>
    %c0_3 = arith.constant 0 : index
    %c0_4 = arith.constant 0 : index
    %3 = vector.load %arg5[%c0_3, %c0_4] : memref<1x128xf32, #tpu.memory_space<vmem>>, vector<1x128xf32>
    %4 = vector.broadcast %3 : vector<1x128xf32> to vector<64x128xf32>
    %5 = arith.addf %2, %4 : vector<64x128xf32>
    %c0_5 = arith.constant 0 : index
    %c0_6 = arith.constant 0 : index
    %6 = vector.load %arg11[%c0_5, %c0_6] : memref<64x128xf32, #tpu.memory_space<vmem>>, vector<64x128xf32>
    tpu.vector_store %arg11[%c0_5, %c0_6], %5 {strides = array<i32>} : memref<64x128xf32, #tpu.memory_space<vmem>>, vector<64x128xf32>,
    %c0_7 = arith.constant 0 : index
    %c0_8 = arith.constant 0 : index
    %7 = vector.load %arg4[%c0_7, %c0_8] : memref<128x128xf32, #tpu.memory_space<vmem>>, vector<128x128xf32>
    %c0_9 = arith.constant 0 : index
    %c0_10 = arith.constant 0 : index
    %8 = vector.load %arg2[%c0_9, %c0_10] : memref<8x128xf32, #tpu.memory_space<vmem>>, vector<8x128xf32>
    %c0_i32 = arith.constant 0 : i32
    %c8_i32 = arith.constant 8 : i32
    %9 = arith.muli %c0_i32, %c8_i32 : i32
    %10 = tpu.assume_multiple %9, 8 : i32
    %11 = arith.index_cast %10 : i32 to index
    %c0_11 = arith.constant 0 : index
    %12 = vector.load %arg11[%11, %c0_11] : memref<64x128xf32, #tpu.memory_space<vmem>>, vector<8x128xf32>
    %cst_12 = arith.constant dense<0.000000e+00> : vector<8x128xf32>
    %13 = tpu.matmul %8, %7, %cst_12 {dimension_numbers = #tpu.dot_dimension_numbers<[1], [0], [0], [1], [0, 0, 1, 1], [], []>} : vector<8x128xf32>, vector<128x128xf32>, vector<8x128xf32> -> vector<8x128xf32>
    %14 = arith.addf %12, %13 : vector<8x128xf32>
    %15 = math.tanh %14 : vector<8x128xf32>
    %c1_i32 = arith.constant 1 : i32
    %c8_i32_13 = arith.constant 8 : i32
    %16 = arith.muli %c1_i32, %c8_i32_13 : i32
    %17 = tpu.assume_multiple %16, 8 : i32
    %18 = arith.index_cast %17 : i32 to index
    %c0_14 = arith.constant 0 : index
    %19 = vector.load %arg11[%18, %c0_14] : memref<64x128xf32, #tpu.memory_space<vmem>>, vector<8x128xf32>
    %cst_15 = arith.constant dense<0.000000e+00> : vector<8x128xf32>
    %20 = tpu.matmul %15, %7, %cst_15 {dimension_numbers = #tpu.dot_dimension_numbers<[1], [0], [0], [1], [0, 0, 1, 1], [], []>} : vector<8x128xf32>, vector<128x128xf32>, vector<8x128xf32> -> vector<8x128xf32>
    %21 = arith.addf %19, %20 : vector<8x128xf32>
    %22 = math.tanh %21 : vector<8x128xf32>
    %c2_i32 = arith.constant 2 : i32
    %c8_i32_16 = arith.constant 8 : i32
    %23 = arith.muli %c2_i32, %c8_i32_16 : i32
    %24 = tpu.assume_multiple %23, 8 : i32
    %25 = arith.index_cast %24 : i32 to index
    %c0_17 = arith.constant 0 : index
    %26 = vector.load %arg11[%25, %c0_17] : memref<64x128xf32, #tpu.memory_space<vmem>>, vector<8x128xf32>
    %cst_18 = arith.constant dense<0.000000e+00> : vector<8x128xf32>
    %27 = tpu.matmul %22, %7, %cst_18 {dimension_numbers = #tpu.dot_dimension_numbers<[1], [0], [0], [1], [0, 0, 1, 1], [], []>} : vector<8x128xf32>, vector<128x128xf32>, vector<8x128xf32> -> vector<8x128xf32>
    %28 = arith.addf %26, %27 : vector<8x128xf32>
    %29 = math.tanh %28 : vector<8x128xf32>
    %c3_i32 = arith.constant 3 : i32
    %c8_i32_19 = arith.constant 8 : i32
    %30 = arith.muli %c3_i32, %c8_i32_19 : i32
    %31 = tpu.assume_multiple %30, 8 : i32
    %32 = arith.index_cast %31 : i32 to index
    %c0_20 = arith.constant 0 : index
    %33 = vector.load %arg11[%32, %c0_20] : memref<64x128xf32, #tpu.memory_space<vmem>>, vector<8x128xf32>
    %cst_21 = arith.constant dense<0.000000e+00> : vector<8x128xf32>
    %34 = tpu.matmul %29, %7, %cst_21 {dimension_numbers = #tpu.dot_dimension_numbers<[1], [0], [0], [1], [0, 0, 1, 1], [], []>} : vector<8x128xf32>, vector<128x128xf32>, vector<8x128xf32> -> vector<8x128xf32>
    %35 = arith.addf %33, %34 : vector<8x128xf32>
    %36 = math.tanh %35 : vector<8x128xf32>
    %c4_i32 = arith.constant 4 : i32
    %c8_i32_22 = arith.constant 8 : i32
    %37 = arith.muli %c4_i32, %c8_i32_22 : i32
    %38 = tpu.assume_multiple %37, 8 : i32
    %39 = arith.index_cast %38 : i32 to index
    %c0_23 = arith.constant 0 : index
    %40 = vector.load %arg11[%39, %c0_23] : memref<64x128xf32, #tpu.memory_space<vmem>>, vector<8x128xf32>
    %cst_24 = arith.constant dense<0.000000e+00> : vector<8x128xf32>
    %41 = tpu.matmul %36, %7, %cst_24 {dimension_numbers = #tpu.dot_dimension_numbers<[1], [0], [0], [1], [0, 0, 1, 1], [], []>} : vector<8x128xf32>, vector<128x128xf32>, vector<8x128xf32> -> vector<8x128xf32>
    %42 = arith.addf %40, %41 : vector<8x128xf32>
    %43 = math.tanh %42 : vector<8x128xf32>
    %c5_i32 = arith.constant 5 : i32
    %c8_i32_25 = arith.constant 8 : i32
    %44 = arith.muli %c5_i32, %c8_i32_25 : i32
    %45 = tpu.assume_multiple %44, 8 : i32
    %46 = arith.index_cast %45 : i32 to index
    %c0_26 = arith.constant 0 : index
    %47 = vector.load %arg11[%46, %c0_26] : memref<64x128xf32, #tpu.memory_space<vmem>>, vector<8x128xf32>
    %cst_27 = arith.constant dense<0.000000e+00> : vector<8x128xf32>
    %48 = tpu.matmul %43, %7, %cst_27 {dimension_numbers = #tpu.dot_dimension_numbers<[1], [0], [0], [1], [0, 0, 1, 1], [], []>} : vector<8x128xf32>, vector<128x128xf32>, vector<8x128xf32> -> vector<8x128xf32>
    %49 = arith.addf %47, %48 : vector<8x128xf32>
    %50 = math.tanh %49 : vector<8x128xf32>
    %c6_i32 = arith.constant 6 : i32
    %c8_i32_28 = arith.constant 8 : i32
    %51 = arith.muli %c6_i32, %c8_i32_28 : i32
    %52 = tpu.assume_multiple %51, 8 : i32
    %53 = arith.index_cast %52 : i32 to index
    %c0_29 = arith.constant 0 : index
    %54 = vector.load %arg11[%53, %c0_29] : memref<64x128xf32, #tpu.memory_space<vmem>>, vector<8x128xf32>
    %cst_30 = arith.constant dense<0.000000e+00> : vector<8x128xf32>
    %55 = tpu.matmul %50, %7, %cst_30 {dimension_numbers = #tpu.dot_dimension_numbers<[1], [0], [0], [1], [0, 0, 1, 1], [], []>} : vector<8x128xf32>, vector<128x128xf32>, vector<8x128xf32> -> vector<8x128xf32>
    %56 = arith.addf %54, %55 : vector<8x128xf32>
    %57 = math.tanh %56 : vector<8x128xf32>
    %c7_i32 = arith.constant 7 : i32
    %c56 = arith.constant 56 : index
    %c0_31 = arith.constant 0 : index
    %58 = vector.load %arg1[%c56, %c0_31] : memref<64x4xf32, #tpu.memory_space<vmem>>, vector<8x4xf32>
    %c0_32 = arith.constant 0 : index
    %c0_33 = arith.constant 0 : index
    %59 = vector.load %arg6[%c0_32, %c0_33] : memref<4x128xf32, #tpu.memory_space<vmem>>, vector<4x128xf32>
    %cst_34 = arith.constant dense<0.000000e+00> : vector<8x128xf32>
    %60 = tpu.matmul %58, %59, %cst_34 {dimension_numbers = #tpu.dot_dimension_numbers<[1], [0], [0], [1], [0, 0, 1, 1], [], []>} : vector<8x4xf32>, vector<4x128xf32>, vector<8x128xf32> -> vector<8x128xf32>
    %c0_35 = arith.constant 0 : index
    %c0_36 = arith.constant 0 : index
    %61 = vector.load %arg7[%c0_35, %c0_36] : memref<128x128xf32, #tpu.memory_space<vmem>>, vector<128x128xf32>
    %cst_37 = arith.constant dense<0.000000e+00> : vector<8x128xf32>
    %62 = tpu.matmul %57, %61, %cst_37 {dimension_numbers = #tpu.dot_dimension_numbers<[1], [0], [0], [1], [0, 0, 1, 1], [], []>} : vector<8x128xf32>, vector<128x128xf32>, vector<8x128xf32> -> vector<8x128xf32>
    %63 = arith.addf %60, %62 : vector<8x128xf32>
    %c0_38 = arith.constant 0 : index
    %c0_39 = arith.constant 0 : index
    %64 = vector.load %arg8[%c0_38, %c0_39] : memref<1x128xf32, #tpu.memory_space<vmem>>, vector<1x128xf32>
    %65 = vector.broadcast %64 : vector<1x128xf32> to vector<8x128xf32>
    %66 = arith.addf %63, %65 : vector<8x128xf32>
    %c0_40 = arith.constant 0 : index
    %c0_41 = arith.constant 0 : index
    %67 = vector.load %arg9[%c0_40, %c0_41] : memref<8x128xf32, #tpu.memory_space<vmem>>, vector<8x128xf32>
    tpu.vector_store %arg9[%c0_40, %c0_41], %66 {strides = array<i32>} : memref<8x128xf32, #tpu.memory_space<vmem>>, vector<8x128xf32>,
    %c56_42 = arith.constant 56 : index
    %c0_43 = arith.constant 0 : index
    %68 = vector.load %arg11[%c56_42, %c0_43] : memref<64x128xf32, #tpu.memory_space<vmem>>, vector<8x128xf32>
    %cst_44 = arith.constant dense<0.000000e+00> : vector<8x128xf32>
    %69 = tpu.matmul %57, %7, %cst_44 {dimension_numbers = #tpu.dot_dimension_numbers<[1], [0], [0], [1], [0, 0, 1, 1], [], []>} : vector<8x128xf32>, vector<128x128xf32>, vector<8x128xf32> -> vector<8x128xf32>
    %70 = arith.addf %68, %69 : vector<8x128xf32>
    %71 = math.tanh %70 : vector<8x128xf32>
    %c0_45 = arith.constant 0 : index
    %c0_46 = arith.constant 0 : index
    %72 = vector.load %arg10[%c0_45, %c0_46] : memref<8x128xf32, #tpu.memory_space<vmem>>, vector<8x128xf32>
    tpu.vector_store %arg10[%c0_45, %c0_46], %71 {strides = array<i32>} : memref<8x128xf32, #tpu.memory_space<vmem>>, vector<8x128xf32>,
    return
  }
  func.func @transform_0(%arg0: i32) -> (i32, i32) {
    %c0_i32 = arith.constant 0 : i32
    %c0_i32_0 = arith.constant 0 : i32
    %c0_i32_1 = arith.constant 0 : i32
    return %c0_i32, %c0_i32_0 : i32, i32
  }
  func.func @transform_1(%arg0: i32) -> (i32, i32) {
    %c0_i32 = arith.constant 0 : i32
    %c0_i32_0 = arith.constant 0 : i32
    %c0_i32_1 = arith.constant 0 : i32
    return %c0_i32, %c0_i32_0 : i32, i32
  }
  func.func @transform_2(%arg0: i32) -> (i32, i32) {
    %c0_i32 = arith.constant 0 : i32
    %c0_i32_0 = arith.constant 0 : i32
    %c0_i32_1 = arith.constant 0 : i32
    return %c0_i32, %c0_i32_0 : i32, i32
  }
  func.func @transform_3(%arg0: i32) -> (i32, i32) {
    %c0_i32 = arith.constant 0 : i32
    %c0_i32_0 = arith.constant 0 : i32
    %c0_i32_1 = arith.constant 0 : i32
    return %c0_i32, %c0_i32_0 : i32, i32
  }
  func.func @transform_4(%arg0: i32) -> (i32, i32) {
    %c0_i32 = arith.constant 0 : i32
    %c0_i32_0 = arith.constant 0 : i32
    %c0_i32_1 = arith.constant 0 : i32
    return %c0_i32, %c0_i32_0 : i32, i32
  }
  func.func @transform_5(%arg0: i32) -> (i32, i32) {
    %c0_i32 = arith.constant 0 : i32
    %c0_i32_0 = arith.constant 0 : i32
    %c0_i32_1 = arith.constant 0 : i32
    return %c0_i32, %c0_i32_0 : i32, i32
  }
  func.func @transform_6(%arg0: i32) -> (i32, i32) {
    %c0_i32 = arith.constant 0 : i32
    %c0_i32_0 = arith.constant 0 : i32
    %c0_i32_1 = arith.constant 0 : i32
    return %c0_i32, %c0_i32_0 : i32, i32
  }
  func.func @transform_7(%arg0: i32) -> (i32, i32) {
    %c0_i32 = arith.constant 0 : i32
    %c0_i32_0 = arith.constant 0 : i32
    %c0_i32_1 = arith.constant 0 : i32
    return %c0_i32, %c0_i32_0 : i32, i32
  }
  func.func @transform_8(%arg0: i32) -> (i32, i32) {
    %c0_i32 = arith.constant 0 : i32
    %c0_i32_0 = arith.constant 0 : i32
    %c0_i32_1 = arith.constant 0 : i32
    return %c0_i32, %c0_i32_0 : i32, i32
  }
  func.func @transform_9(%arg0: i32) -> (i32, i32) {
    %c0_i32 = arith.constant 0 : i32
    %c0_i32_0 = arith.constant 0 : i32
    %c0_i32_1 = arith.constant 0 : i32
    return %c0_i32, %c0_i32_0 : i32, i32
  }
}

</mosaic_0001>

<llo_original>
// kernel: _simple_rnn_forward_impl.1
$region0: #{_simple_rnn_forward_impl.1}
  #allocation0 [shape = 'u32[]', space=smem, size = 0x4, offset = 0x4, fixed_abs, tag = 'smem constant byte address 0x4 - core index']
  #allocation1 [shape = 'u32[72,128]{1,0:T(1,128)}', space=vmem, size = 0x9000, scoped, tag = 'internal scratch']
  #allocation2 [shape = 'f32[64,128]{1,0:T(8,128)}', space=vmem, size = 0x8000, scoped, tag = 'scratch operand']
  %s0 = inlined_call_operand.vmem [shape: f32[64,4], index: 0, kind: input, shape index: {}]
  %s1 = inlined_call_operand.vmem [shape: f32[8,128], index: 1, kind: input, shape index: {}]
  %s2 = inlined_call_operand.vmem [shape: f32[4,128], index: 2, kind: input, shape index: {}]
  %s3 = inlined_call_operand.hbm [shape: f32[128,128], index: 3, kind: input, shape index: {}]
  %s4 = inlined_call_operand.vmem [shape: f32[1,128], index: 4, kind: input, shape index: {}]
  %s5 = inlined_call_operand.vmem [shape: f32[4,128], index: 5, kind: input, shape index: {}]
  %s6 = inlined_call_operand.hbm [shape: f32[128,128], index: 6, kind: input, shape index: {}]
  %s7 = inlined_call_operand.vmem [shape: f32[1,128], index: 7, kind: input, shape index: {}]
  %s8 = inlined_call_operand.vmem [shape: f32[8,128], index: 8, kind: output, shape index: {0}]
  %s9 = inlined_call_operand.vmem [shape: f32[8,128], index: 9, kind: output, shape index: {1}]
  %10 = xla_tuple %s8, %s9
  %s11 = sld [smem:[#allocation0]]
  $region58: #{_simple_rnn_forward_impl.1} parent=0
    _
  %s13 = ssub.s32 1, %s11
  %s14 = scalar_select 0, %s13, %s11
  $region1: #{_simple_rnn_forward_impl.1} parent=0
    #allocation3 [shape = 'u8[65536]{0}', space=vmem, size = 0x10000, scoped, tag = 'input window, operand 3, single buffered']
    #allocation4 [shape = 's32[1]{0}', space=sflag, size = 0x4, scoped, tag = 'scoped memory for _simple_rnn_forward_impl.1']
    #allocation5 [shape = 'u8[65536]{0}', space=vmem, size = 0x10000, scoped, tag = 'input window, operand 6, single buffered']
    #allocation6 [shape = 's32[1]{0}', space=sflag, size = 0x4, scoped, tag = 'scoped memory for _simple_rnn_forward_impl.1']
    %15 = vsyncpa [#allocation4], 0
    %16 = vsyncpa [#allocation6], 0
    // Predicated region
    $region2: #{_simple_rnn_forward_impl.1} parent=1 // pred_check
      _
    $region3: #{_simple_rnn_forward_impl.1} parent=1 // pred_check_branch
      %18 = sbr.rel (0) target = $region5
    $region4: #{_simple_rnn_forward_impl.1} parent=1 // pred_region
      _
    $region5: #{_simple_rnn_forward_impl.1} parent=1 // pred_fallthru
      _
    // Predicated region
    $region6: #{_simple_rnn_forward_impl.1} parent=1 // pred_check
      _
    $region7: #{_simple_rnn_forward_impl.1} parent=1 // pred_check_branch
      %20 = sbr.rel (0) target = $region9
    $region8: #{_simple_rnn_forward_impl.1} parent=1 // pred_region
      _
    $region9: #{_simple_rnn_forward_impl.1} parent=1 // pred_fallthru
      _
    // Predicated region
    $region10: #{_simple_rnn_forward_impl.1} parent=1 // pred_check
      _
    $region11: #{_simple_rnn_forward_impl.1} parent=1 // pred_check_branch
      %22 = sbr.rel (0) target = $region13
    $region12: #{_simple_rnn_forward_impl.1} parent=1 // pred_region
      _
    $region13: #{_simple_rnn_forward_impl.1} parent=1 // pred_fallthru
      _
    // Predicated region
    $region14: #{_simple_rnn_forward_impl.1} parent=1 // pred_check
      _
    $region15: #{_simple_rnn_forward_impl.1} parent=1 // pred_check_branch
      %24 = sbr.rel (0) target = $region17
    $region16: #{_simple_rnn_forward_impl.1} parent=1 // pred_region
      %26 = vsyncadd [#allocation4], 0
      %s27 = sshll.u32 %s3, 4
      %s28 = int_to_ptr.hbm [resolvable:$true] %s27
      %s29 = sshll.u32 [#allocation3], 4
      %s30 = int_to_ptr.vmem [resolvable:$true] %s29
      %35 = dma.hbm_to_vmem [thread:$0]  %s28, 2048, %s30, [#allocation4], 128, 128, 8
    $region17: #{_simple_rnn_forward_impl.1} parent=1 // pred_fallthru
      _
    // Predicated region
    $region18: #{_simple_rnn_forward_impl.1} parent=1 // pred_check
      _
    $region19: #{_simple_rnn_forward_impl.1} parent=1 // pred_check_branch
      %37 = sbr.rel (0) target = $region21
    $region20: #{_simple_rnn_forward_impl.1} parent=1 // pred_region
      _
    $region21: #{_simple_rnn_forward_impl.1} parent=1 // pred_fallthru
      _
    // Predicated region
    $region22: #{_simple_rnn_forward_impl.1} parent=1 // pred_check
      _
    $region23: #{_simple_rnn_forward_impl.1} parent=1 // pred_check_branch
      %39 = sbr.rel (0) target = $region25
    $region24: #{_simple_rnn_forward_impl.1} parent=1 // pred_region
      _
    $region25: #{_simple_rnn_forward_impl.1} parent=1 // pred_fallthru
      _
    // Predicated region
    $region26: #{_simple_rnn_forward_impl.1} parent=1 // pred_check
      _
    $region27: #{_simple_rnn_forward_impl.1} parent=1 // pred_check_branch
      %41 = sbr.rel (0) target = $region29
    $region28: #{_simple_rnn_forward_impl.1} parent=1 // pred_region
      %43 = vsyncadd [#allocation6], 0
      %s44 = sshll.u32 %s6, 4
      %s45 = int_to_ptr.hbm [resolvable:$true] %s44
      %s46 = sshll.u32 [#allocation5], 4
      %s47 = int_to_ptr.vmem [resolvable:$true] %s46
      %52 = dma.hbm_to_vmem [thread:$0]  %s45, 2048, %s47, [#allocation6], 128, 128, 8
    $region29: #{_simple_rnn_forward_impl.1} parent=1 // pred_fallthru
      _
    // Predicated region
    $region30: #{_simple_rnn_forward_impl.1} parent=1 // pred_check
      _
    $region31: #{_simple_rnn_forward_impl.1} parent=1 // pred_check_branch
      %54 = sbr.rel (0) target = $region33
    $region32: #{_simple_rnn_forward_impl.1} parent=1 // pred_region
      _
    $region33: #{_simple_rnn_forward_impl.1} parent=1 // pred_fallthru
      _
    // Predicated region
    $region34: #{_simple_rnn_forward_impl.1} parent=1 // pred_check
      _
    $region35: #{_simple_rnn_forward_impl.1} parent=1 // pred_check_branch
      %56 = sbr.rel (0) target = $region37
    $region36: #{_simple_rnn_forward_impl.1} parent=1 // pred_region
      %58 = dma.done [#allocation4], 2048
    $region37: #{_simple_rnn_forward_impl.1} parent=1 // pred_fallthru
      _
    // Predicated region
    $region38: #{_simple_rnn_forward_impl.1} parent=1 // pred_check
      _
    $region39: #{_simple_rnn_forward_impl.1} parent=1 // pred_check_branch
      %60 = sbr.rel (0) target = $region41
    $region40: #{_simple_rnn_forward_impl.1} parent=1 // pred_region
      %62 = dma.done [#allocation6], 2048
    $region41: #{_simple_rnn_forward_impl.1} parent=1 // pred_fallthru
      _
    %v63 = vld [vmem:[%s0] sm:$0xff]
    %v64 = vld [vmem:[%s0 + $0x8] sm:$0xff]
    %v65 = vld [vmem:[%s0 + $0x10] sm:$0xff]
    %v66 = vld [vmem:[%s0 + $0x18] sm:$0xff]
    %v67 = vld [vmem:[%s0 + $0x20] sm:$0xff]
    %v68 = vld [vmem:[%s0 + $0x28] sm:$0xff]
    %v69 = vld [vmem:[%s0 + $0x30] sm:$0xff]
    %v70 = vld [vmem:[%s0 + $0x38] sm:$0xff]
    %v71 = vld [vmem:[%s2] sm:$0xf]
    %v72 = vld [vmem:[%s4] sm:$0x1]
    %v74 = vperm.slane %v72, 0
    %vm76 = vcmask 31744
    %v78 = vsel %vm76, %v63, 0
    %v81 = vsel %vm76, %v64, 0
    %v84 = vsel %vm76, %v65, 0
    %v87 = vsel %vm76, %v66, 0
    %v90 = vsel %vm76, %v67, 0
    %v93 = vsel %vm76, %v68, 0
    %v96 = vsel %vm76, %v69, 0
    %v99 = vsel %vm76, %v70, 0
    %vm101 = vcmask 1043456
    %v103 = vsel %vm101, %v71, 0
    %105 = vmatpush.msra.mxu0 0.0
    %106 = vmatpush.msra.mxu0 0.0
    %107 = vmatpush.msra.mxu0 0.0
    %108 = vmatpush.msra.mxu0 0.0
    %109 = vmatpush.msra.mxu0 0.0
    %110 = vmatpush.msra.mxu0 0.0
    %111 = vmatpush.msra.mxu0 0.0
    %112 = vmatpush.msra.mxu0 0.0
    %113 = vmatpush.msra.mxu0 0.0
    %114 = vmatpush.msra.mxu0 0.0
    %115 = vmatpush.msra.mxu0 0.0
    %116 = vmatpush.msra.mxu0 0.0
    %117 = vmatpush.msra.mxu0 0.0
    %118 = vmatpush.msra.mxu0 0.0
    %119 = vmatpush.msra.mxu0 0.0
    %120 = vmatpush.msra.mxu0 %v103
    %121 = vmatmul.f32.gmra.mxu0 %v78
    %v122 = vpop.f32.mrf.mxu0
    %v123 = vadd.f32 %v74, %v122
    %124 = vmatmul.f32.gmra.mxu0 %v81
    %v125 = vpop.f32.mrf.mxu0
    %v126 = vadd.f32 %v74, %v125
    %127 = vmatmul.f32.gmra.mxu0 %v84
    %v128 = vpop.f32.mrf.mxu0
    %v129 = vadd.f32 %v74, %v128
    %130 = vmatmul.f32.gmra.mxu0 %v87
    %v131 = vpop.f32.mrf.mxu0
    %v132 = vadd.f32 %v74, %v131
    %133 = vmatmul.f32.gmra.mxu0 %v90
    %v134 = vpop.f32.mrf.mxu0
    %v135 = vadd.f32 %v74, %v134
    %136 = vmatmul.f32.gmra.mxu0 %v93
    %v137 = vpop.f32.mrf.mxu0
    %v138 = vadd.f32 %v74, %v137
    %139 = vmatmul.f32.gmra.mxu0 %v96
    %v140 = vpop.f32.mrf.mxu0
    %v141 = vadd.f32 %v74, %v140
    %142 = vmatmul.f32.gmra.mxu0 %v99
    %v143 = vpop.f32.mrf.mxu0
    %v144 = vadd.f32 %v74, %v143
    %145 = vdwg.mxu0
    %146 = vst [vmem:[#allocation2] sm:$0xff] %v123
    %147 = vst [vmem:[#allocation2 + $0x8] sm:$0xff] %v126
    %148 = vst [vmem:[#allocation2 + $0x10] sm:$0xff] %v129
    %149 = vst [vmem:[#allocation2 + $0x18] sm:$0xff] %v132
    %150 = vst [vmem:[#allocation2 + $0x20] sm:$0xff] %v135
    %151 = vst [vmem:[#allocation2 + $0x28] sm:$0xff] %v138
    %152 = vst [vmem:[#allocation2 + $0x30] sm:$0xff] %v141
    %153 = vst [vmem:[#allocation2 + $0x38] sm:$0xff] %v144
    %v154 = vld [vmem:[#allocation3] sm:$0xff]
    %v155 = vld [vmem:[#allocation3 + $0x8] sm:$0xff]
    %v156 = vld [vmem:[#allocation3 + $0x10] sm:$0xff]
    %v157 = vld [vmem:[#allocation3 + $0x18] sm:$0xff]
    %v158 = vld [vmem:[#allocation3 + $0x20] sm:$0xff]
    %v159 = vld [vmem:[#allocation3 + $0x28] sm:$0xff]
    %v160 = vld [vmem:[#allocation3 + $0x30] sm:$0xff]
    %v161 = vld [vmem:[#allocation3 + $0x38] sm:$0xff]
    %v162 = vld [vmem:[#allocation3 + $0x40] sm:$0xff]
    %v163 = vld [vmem:[#allocation3 + $0x48] sm:$0xff]
    %v164 = vld [vmem:[#allocation3 + $0x50] sm:$0xff]
    %v165 = vld [vmem:[#allocation3 + $0x58] sm:$0xff]
    %v166 = vld [vmem:[#allocation3 + $0x60] sm:$0xff]
    %v167 = vld [vmem:[#allocation3 + $0x68] sm:$0xff]
    %v168 = vld [vmem:[#allocation3 + $0x70] sm:$0xff]
    %v169 = vld [vmem:[#allocation3 + $0x78] sm:$0xff]
    %v170 = vld [vmem:[%s1] sm:$0xff]
    %v171 = vld [vmem:[#allocation2] sm:$0xff]
    %172 = vmatpush.msra.mxu0 %v169
    %173 = vmatpush.msra.mxu0 %v168
    %174 = vmatpush.msra.mxu0 %v167
    %175 = vmatpush.msra.mxu0 %v166
    %176 = vmatpush.msra.mxu0 %v165
    %177 = vmatpush.msra.mxu0 %v164
    %178 = vmatpush.msra.mxu0 %v163
    %179 = vmatpush.msra.mxu0 %v162
    %180 = vmatpush.msra.mxu0 %v161
    %181 = vmatpush.msra.mxu0 %v160
    %182 = vmatpush.msra.mxu0 %v159
    %183 = vmatpush.msra.mxu0 %v158
    %184 = vmatpush.msra.mxu0 %v157
    %185 = vmatpush.msra.mxu0 %v156
    %186 = vmatpush.msra.mxu0 %v155
    %187 = vmatpush.msra.mxu0 %v154
    %188 = vmatmul.f32.gmra.mxu0 %v170
    %v189 = vpop.f32.mrf.mxu0
    %v190 = vadd.f32 0.0, %v189
    %191 = vdwg.mxu0
    %v192 = vadd.f32 %v171, %v190
    %v193 = vtanh.pop %v192
    %s194 = scalar_lea.vmem [#allocation2], 8
    %v195 = vld [vmem:[%s194] sm:$0xff]
    %196 = vmatpush.msra.mxu0 %v169
    %197 = vmatpush.msra.mxu0 %v168
    %198 = vmatpush.msra.mxu0 %v167
    %199 = vmatpush.msra.mxu0 %v166
    %200 = vmatpush.msra.mxu0 %v165
    %201 = vmatpush.msra.mxu0 %v164
    %202 = vmatpush.msra.mxu0 %v163
    %203 = vmatpush.msra.mxu0 %v162
    %204 = vmatpush.msra.mxu0 %v161
    %205 = vmatpush.msra.mxu0 %v160
    %206 = vmatpush.msra.mxu0 %v159
    %207 = vmatpush.msra.mxu0 %v158
    %208 = vmatpush.msra.mxu0 %v157
    %209 = vmatpush.msra.mxu0 %v156
    %210 = vmatpush.msra.mxu0 %v155
    %211 = vmatpush.msra.mxu0 %v154
    %212 = vmatmul.f32.gmra.mxu0 %v193
    %v213 = vpop.f32.mrf.mxu0
    %v214 = vadd.f32 0.0, %v213
    %215 = vdwg.mxu0
    %v216 = vadd.f32 %v195, %v214
    %v217 = vtanh.pop %v216
    %s218 = scalar_lea.vmem [#allocation2], 16
    %v219 = vld [vmem:[%s218] sm:$0xff]
    %220 = vmatpush.msra.mxu0 %v169
    %221 = vmatpush.msra.mxu0 %v168
    %222 = vmatpush.msra.mxu0 %v167
    %223 = vmatpush.msra.mxu0 %v166
    %224 = vmatpush.msra.mxu0 %v165
    %225 = vmatpush.msra.mxu0 %v164
    %226 = vmatpush.msra.mxu0 %v163
    %227 = vmatpush.msra.mxu0 %v162
    %228 = vmatpush.msra.mxu0 %v161
    %229 = vmatpush.msra.mxu0 %v160
    %230 = vmatpush.msra.mxu0 %v159
    %231 = vmatpush.msra.mxu0 %v158
    %232 = vmatpush.msra.mxu0 %v157
    %233 = vmatpush.msra.mxu0 %v156
    %234 = vmatpush.msra.mxu0 %v155
    %235 = vmatpush.msra.mxu0 %v154
    %236 = vmatmul.f32.gmra.mxu0 %v217
    %v237 = vpop.f32.mrf.mxu0
    %v238 = vadd.f32 0.0, %v237
    %239 = vdwg.mxu0
    %v240 = vadd.f32 %v219, %v238
    %v241 = vtanh.pop %v240
    %s242 = scalar_lea.vmem [#allocation2], 24
    %v243 = vld [vmem:[%s242] sm:$0xff]
    %244 = vmatpush.msra.mxu0 %v169
    %245 = vmatpush.msra.mxu0 %v168
    %246 = vmatpush.msra.mxu0 %v167
    %247 = vmatpush.msra.mxu0 %v166
    %248 = vmatpush.msra.mxu0 %v165
    %249 = vmatpush.msra.mxu0 %v164
    %250 = vmatpush.msra.mxu0 %v163
    %251 = vmatpush.msra.mxu0 %v162
    %252 = vmatpush.msra.mxu0 %v161
    %253 = vmatpush.msra.mxu0 %v160
    %254 = vmatpush.msra.mxu0 %v159
    %255 = vmatpush.msra.mxu0 %v158
    %256 = vmatpush.msra.mxu0 %v157
    %257 = vmatpush.msra.mxu0 %v156
    %258 = vmatpush.msra.mxu0 %v155
    %259 = vmatpush.msra.mxu0 %v154
    %260 = vmatmul.f32.gmra.mxu0 %v241
    %v261 = vpop.f32.mrf.mxu0
    %v262 = vadd.f32 0.0, %v261
    %263 = vdwg.mxu0
    %v264 = vadd.f32 %v243, %v262
    %v265 = vtanh.pop %v264
    %s266 = scalar_lea.vmem [#allocation2], 32
    %v267 = vld [vmem:[%s266] sm:$0xff]
    %268 = vmatpush.msra.mxu0 %v169
    %269 = vmatpush.msra.mxu0 %v168
    %270 = vmatpush.msra.mxu0 %v167
    %271 = vmatpush.msra.mxu0 %v166
    %272 = vmatpush.msra.mxu0 %v165
    %273 = vmatpush.msra.mxu0 %v164
    %274 = vmatpush.msra.mxu0 %v163
    %275 = vmatpush.msra.mxu0 %v162
    %276 = vmatpush.msra.mxu0 %v161
    %277 = vmatpush.msra.mxu0 %v160
    %278 = vmatpush.msra.mxu0 %v159
    %279 = vmatpush.msra.mxu0 %v158
    %280 = vmatpush.msra.mxu0 %v157
    %281 = vmatpush.msra.mxu0 %v156
    %282 = vmatpush.msra.mxu0 %v155
    %283 = vmatpush.msra.mxu0 %v154
    %284 = vmatmul.f32.gmra.mxu0 %v265
    %v285 = vpop.f32.mrf.mxu0
    %v286 = vadd.f32 0.0, %v285
    %287 = vdwg.mxu0
    %v288 = vadd.f32 %v267, %v286
    %v289 = vtanh.pop %v288
    %s290 = scalar_lea.vmem [#allocation2], 40
    %v291 = vld [vmem:[%s290] sm:$0xff]
    %292 = vmatpush.msra.mxu0 %v169
    %293 = vmatpush.msra.mxu0 %v168
    %294 = vmatpush.msra.mxu0 %v167
    %295 = vmatpush.msra.mxu0 %v166
    %296 = vmatpush.msra.mxu0 %v165
    %297 = vmatpush.msra.mxu0 %v164
    %298 = vmatpush.msra.mxu0 %v163
    %299 = vmatpush.msra.mxu0 %v162
    %300 = vmatpush.msra.mxu0 %v161
    %301 = vmatpush.msra.mxu0 %v160
    %302 = vmatpush.msra.mxu0 %v159
    %303 = vmatpush.msra.mxu0 %v158
    %304 = vmatpush.msra.mxu0 %v157
    %305 = vmatpush.msra.mxu0 %v156
    %306 = vmatpush.msra.mxu0 %v155
    %307 = vmatpush.msra.mxu0 %v154
    %308 = vmatmul.f32.gmra.mxu0 %v289
    %v309 = vpop.f32.mrf.mxu0
    %v310 = vadd.f32 0.0, %v309
    %311 = vdwg.mxu0
    %v312 = vadd.f32 %v291, %v310
    %v313 = vtanh.pop %v312
    %s314 = scalar_lea.vmem [#allocation2], 48
    %v315 = vld [vmem:[%s314] sm:$0xff]
    %316 = vmatpush.msra.mxu0 %v169
    %317 = vmatpush.msra.mxu0 %v168
    %318 = vmatpush.msra.mxu0 %v167
    %319 = vmatpush.msra.mxu0 %v166
    %320 = vmatpush.msra.mxu0 %v165
    %321 = vmatpush.msra.mxu0 %v164
    %322 = vmatpush.msra.mxu0 %v163
    %323 = vmatpush.msra.mxu0 %v162
    %324 = vmatpush.msra.mxu0 %v161
    %325 = vmatpush.msra.mxu0 %v160
    %326 = vmatpush.msra.mxu0 %v159
    %327 = vmatpush.msra.mxu0 %v158
    %328 = vmatpush.msra.mxu0 %v157
    %329 = vmatpush.msra.mxu0 %v156
    %330 = vmatpush.msra.mxu0 %v155
    %331 = vmatpush.msra.mxu0 %v154
    %332 = vmatmul.f32.gmra.mxu0 %v313
    %v333 = vpop.f32.mrf.mxu0
    %v334 = vadd.f32 0.0, %v333
    %335 = vdwg.mxu0
    %v336 = vadd.f32 %v315, %v334
    %v337 = vtanh.pop %v336
    %v338 = vld [vmem:[%s0 + $0x38] sm:$0xff]
    %v339 = vld [vmem:[%s5] sm:$0xf]
    %v340 = vld [vmem:[#allocation5] sm:$0xff]
    %v341 = vld [vmem:[#allocation5 + $0x8] sm:$0xff]
    %v342 = vld [vmem:[#allocation5 + $0x10] sm:$0xff]
    %v343 = vld [vmem:[#allocation5 + $0x18] sm:$0xff]
    %v344 = vld [vmem:[#allocation5 + $0x20] sm:$0xff]
    %v345 = vld [vmem:[#allocation5 + $0x28] sm:$0xff]
    %v346 = vld [vmem:[#allocation5 + $0x30] sm:$0xff]
    %v347 = vld [vmem:[#allocation5 + $0x38] sm:$0xff]
    %v348 = vld [vmem:[#allocation5 + $0x40] sm:$0xff]
    %v349 = vld [vmem:[#allocation5 + $0x48] sm:$0xff]
    %v350 = vld [vmem:[#allocation5 + $0x50] sm:$0xff]
    %v351 = vld [vmem:[#allocation5 + $0x58] sm:$0xff]
    %v352 = vld [vmem:[#allocation5 + $0x60] sm:$0xff]
    %v353 = vld [vmem:[#allocation5 + $0x68] sm:$0xff]
    %v354 = vld [vmem:[#allocation5 + $0x70] sm:$0xff]
    %v355 = vld [vmem:[#allocation5 + $0x78] sm:$0xff]
    %356 = vmatpush.msra.mxu0 %v355
    %357 = vmatpush.msra.mxu0 %v354
    %358 = vmatpush.msra.mxu0 %v353
    %359 = vmatpush.msra.mxu0 %v352
    %360 = vmatpush.msra.mxu0 %v351
    %361 = vmatpush.msra.mxu0 %v350
    %362 = vmatpush.msra.mxu0 %v349
    %363 = vmatpush.msra.mxu0 %v348
    %364 = vmatpush.msra.mxu0 %v347
    %365 = vmatpush.msra.mxu0 %v346
    %366 = vmatpush.msra.mxu0 %v345
    %367 = vmatpush.msra.mxu0 %v344
    %368 = vmatpush.msra.mxu0 %v343
    %369 = vmatpush.msra.mxu0 %v342
    %370 = vmatpush.msra.mxu0 %v341
    %371 = vmatpush.msra.mxu0 %v340
    %372 = vmatmul.f32.gmra.mxu0 %v337
    %v373 = vpop.f32.mrf.mxu0
    %v374 = vadd.f32 0.0, %v373
    %375 = vdwg.mxu0
    %v377 = vsel %vm76, %v338, 0
    %v380 = vsel %vm101, %v339, 0
    %382 = vmatpush.msra.mxu0 0.0
    %383 = vmatpush.msra.mxu0 0.0
    %384 = vmatpush.msra.mxu0 0.0
    %385 = vmatpush.msra.mxu0 0.0
    %386 = vmatpush.msra.mxu0 0.0
    %387 = vmatpush.msra.mxu0 0.0
    %388 = vmatpush.msra.mxu0 0.0
    %389 = vmatpush.msra.mxu0 0.0
    %390 = vmatpush.msra.mxu0 0.0
    %391 = vmatpush.msra.mxu0 0.0
    %392 = vmatpush.msra.mxu0 0.0
    %393 = vmatpush.msra.mxu0 0.0
    %394 = vmatpush.msra.mxu0 0.0
    %395 = vmatpush.msra.mxu0 0.0
    %396 = vmatpush.msra.mxu0 0.0
    %397 = vmatpush.msra.mxu0 %v380
    %398 = vmatmul.f32.gmra.mxu0 %v377
    %v399 = vpop.f32.mrf.mxu0
    %v400 = vadd.f32 %v374, %v399
    %401 = vdwg.mxu0
    %v402 = vld [vmem:[%s7] sm:$0x1]
    %v404 = vperm.slane %v402, 0
    %v406 = vadd.f32 %v400, %v404
    %407 = vst [vmem:[%s8] sm:$0xff] %v406
    %v408 = vld [vmem:[#allocation2 + $0x38] sm:$0xff]
    %409 = vmatpush.msra.mxu0 %v169
    %410 = vmatpush.msra.mxu0 %v168
    %411 = vmatpush.msra.mxu0 %v167
    %412 = vmatpush.msra.mxu0 %v166
    %413 = vmatpush.msra.mxu0 %v165
    %414 = vmatpush.msra.mxu0 %v164
    %415 = vmatpush.msra.mxu0 %v163
    %416 = vmatpush.msra.mxu0 %v162
    %417 = vmatpush.msra.mxu0 %v161
    %418 = vmatpush.msra.mxu0 %v160
    %419 = vmatpush.msra.mxu0 %v159
    %420 = vmatpush.msra.mxu0 %v158
    %421 = vmatpush.msra.mxu0 %v157
    %422 = vmatpush.msra.mxu0 %v156
    %423 = vmatpush.msra.mxu0 %v155
    %424 = vmatpush.msra.mxu0 %v154
    %425 = vmatmul.f32.gmra.mxu0 %v337
    %v426 = vpop.f32.mrf.mxu0
    %v427 = vadd.f32 0.0, %v426
    %428 = vdwg.mxu0
    %v429 = vadd.f32 %v408, %v427
    %v430 = vtanh.pop %v429
    %431 = vst [vmem:[%s9] sm:$0xff] %v430
    // Predicated region
    $region42: #{_simple_rnn_forward_impl.1} parent=1 // pred_check
      _
    $region43: #{_simple_rnn_forward_impl.1} parent=1 // pred_check_branch
      %433 = sbr.rel (0) target = $region45
    $region44: #{_simple_rnn_forward_impl.1} parent=1 // pred_region
      _
    $region45: #{_simple_rnn_forward_impl.1} parent=1 // pred_fallthru
      _
    // Predicated region
    $region46: #{_simple_rnn_forward_impl.1} parent=1 // pred_check
      _
    $region47: #{_simple_rnn_forward_impl.1} parent=1 // pred_check_branch
      %435 = sbr.rel (0) target = $region49
    $region48: #{_simple_rnn_forward_impl.1} parent=1 // pred_region
      _
    $region49: #{_simple_rnn_forward_impl.1} parent=1 // pred_fallthru
      _
    // Predicated region
    $region50: #{_simple_rnn_forward_impl.1} parent=1 // pred_check
      _
    $region51: #{_simple_rnn_forward_impl.1} parent=1 // pred_check_branch
      %437 = sbr.rel (0) target = $region53
    $region52: #{_simple_rnn_forward_impl.1} parent=1 // pred_region
      _
    $region53: #{_simple_rnn_forward_impl.1} parent=1 // pred_fallthru
      _
    // Predicated region
    $region54: #{_simple_rnn_forward_impl.1} parent=1 // pred_check
      _
    $region55: #{_simple_rnn_forward_impl.1} parent=1 // pred_check_branch
      %439 = sbr.rel (0) target = $region57
    $region56: #{_simple_rnn_forward_impl.1} parent=1 // pred_region
      _
    $region57: #{_simple_rnn_forward_impl.1} parent=1 // pred_fallthru
      _
    %440 = vsyncpa [#allocation4], 1
    %441 = vsyncpa [#allocation6], 1

</llo_original>
